<compile_context>
chip_gen: v7x
topology: tpu7x:2x2x1
jax: 0.10.0
libtpu: 0.0.40
codegen_flags: <defaults>
</compile_context>

<pallas_src>
import math

import jax
import jax.numpy as jnp
from jax.experimental import pallas as pl
from jax.experimental.pallas import tpu as pltpu


def _rope_kernel(x_ref, p_ref, cos_ref, sin_ref, o_ref):
    # x_ref : (TS, D)   interleaved input tile for one (seq-tile, batch) grid point
    # p_ref : (D, D)    0/1 permutation matrix: x @ P = [x_even | x_odd]
    # cos_ref/sin_ref : (TS, Dh) float32
    # o_ref : (TS, D)   output tile = [x1*cos - x2*sin | x1*sin + x2*cos]
    dh = cos_ref.shape[-1]

    x = x_ref[...]
    # Exact even/odd de-interleave on the MXU. P has exactly one 1.0 per column, so with
    # HIGHEST precision the f32 values are reproduced bit-exactly; the MXU is otherwise
    # idle in this bandwidth-bound kernel, so this is hidden under the DMA.
    xs = jnp.dot(
        x,
        p_ref[...],
        precision=jax.lax.Precision.HIGHEST,
        preferred_element_type=jnp.float32,
    )  # (TS, D) f32 : [evens | odds]

    x1 = xs[:, :dh]
    x2 = xs[:, dh:]
    c = cos_ref[...].astype(jnp.float32)
    s = sin_ref[...].astype(jnp.float32)

    # Two direct, static, contiguous half-writes; no concatenated temporary.
    o_ref[:, :dh] = (x1 * c - x2 * s).astype(o_ref.dtype)
    o_ref[:, dh:] = (x1 * s + x2 * c).astype(o_ref.dtype)


def _pick_seq_tile(S, D, itemsize, perm_bytes):
    """Pick a sequence-tile size TS.

    Budget: x and out tiles are double-buffered (4 * TS*D*itemsize live), the (D, D)
    permutation matrix is double-buffered too (2 * perm_bytes).  Keep the total well
    under the 32 MiB scoped-VMEM limit, target ~1-2 MiB per x tile, and require TS to
    divide S with TS % 8 == 0 (or TS == S) so every block shape is legal.
    """
    budget = 24 * 1024 * 1024
    per_row = 4 * D * itemsize                       # x tile + out tile, double-buffered
    avail = max(budget - 2 * perm_bytes, 8 * per_row)
    max_rows = int(min(avail // per_row,
                       (2 * 1024 * 1024) // max(1, D * itemsize),
                       4096, S))
    max_rows = max(max_rows, 1)
    for ts in range(max_rows, 0, -1):
        if S % ts == 0 and (ts % 8 == 0 or ts == S):
            return ts
    return S  # fallback: whole sequence as one block (always a legal block shape)


def rotary_positional_encoding(x, sin_pos, cos_pos):
    """x: (B, S, D); sin_pos/cos_pos: (max_len, D//2). Returns (B, S, D)."""
    B, S, D = x.shape
    if D % 2 != 0:
        raise ValueError(f"d_model must be even, got {D}")
    if S > sin_pos.shape[0] or S > cos_pos.shape[0]:
        raise ValueError(f"seq_len {S} exceeds rotary table max_len {sin_pos.shape[0]}")
    Dh = D // 2

    perm_bytes = D * D * x.dtype.itemsize
    TS = _pick_seq_tile(S, D, x.dtype.itemsize, perm_bytes)
    n_seq_tiles = S // TS

    # Tables for the current sequence length, kept in float32 (full-precision angles
    # even for bf16 activations); the kernel computes in f32 and casts on store.
    cos = cos_pos[:S].astype(jnp.float32)
    sin = sin_pos[:S].astype(jnp.float32)

    # Permutation matrix P: row 2j -> column j, row 2j+1 -> column Dh+j,
    # so (x @ P) = concat([x[..., ::2], x[..., 1::2]], axis=-1).
    rows = jnp.arange(D)
    cols = jnp.where(rows % 2 == 0, rows // 2, Dh + rows // 2)
    perm = jax.nn.one_hot(cols, D, dtype=x.dtype)  # (D, D)

    # Grid: (seq tiles, batch) with batch fastest-varying so perm/cos/sin block indices
    # stay constant across consecutive steps (resident, no re-fetch per batch element).
    out = pl.pallas_call(
        _rope_kernel,
        out_shape=jax.ShapeDtypeStruct((B, S, D), x.dtype),
        grid=(n_seq_tiles, B),
        in_specs=[
            pl.BlockSpec((pl.Squeezed(), TS, D), lambda s, b: (b, s, 0)),  # x
            pl.BlockSpec((D, D), lambda s, b: (0, 0)),                     # perm
            pl.BlockSpec((TS, Dh), lambda s, b: (s, 0)),                   # cos
            pl.BlockSpec((TS, Dh), lambda s, b: (s, 0)),                   # sin
        ],
        out_specs=pl.BlockSpec((pl.Squeezed(), TS, D), lambda s, b: (b, s, 0)),
        compiler_params=pltpu.CompilerParams(
            dimension_semantics=("parallel", "parallel"),
            vmem_limit_bytes=32 * 1024 * 1024,
        ),
    )(x, perm, cos, sin)
    return out


def make_rope_tables(d_model, max_len=5000):
    """Deterministic buffers, exactly as in the PyTorch __init__."""
    position = jnp.arange(0, max_len, dtype=jnp.float32)[:, None]          # (max_len, 1)
    div_term = jnp.exp(
        jnp.arange(0, d_model, 2, dtype=jnp.float32) * -(math.log(10000.0) / d_model)
    )                                                                       # (d_model//2,)
    angles = position * div_term                                            # (max_len, d_model//2)
    return jnp.sin(angles), jnp.cos(angles)


def rotary_reference(x, sin_pos, cos_pos):
    """Pure-JAX reference matching the PyTorch forward (dropout in eval mode)."""
    S = x.shape[1]
    x1 = x[..., ::2]
    x2 = x[..., 1::2]
    cos = cos_pos[:S]
    sin = sin_pos[:S]
    return jnp.concatenate([x1 * cos - x2 * sin, x1 * sin + x2 * cos], axis=-1)


if __name__ == "__main__":
    batch, seq, d_model = 2, 8, 32
    key = jax.random.PRNGKey(0)
    x = jax.random.normal(key, (batch, seq, d_model), dtype=jnp.float32)

    sin_pos, cos_pos = make_rope_tables(d_model, max_len=5000)

    out = rotary_positional_encoding(x, sin_pos, cos_pos)
    out = jax.block_until_ready(out)

    ref = rotary_reference(x, sin_pos, cos_pos)
    assert out.shape == (batch, seq, d_model)
    assert jnp.allclose(out, ref, atol=1e-5, rtol=1e-5)

    print("KERNEL_OK")
</pallas_src>

<mosaic_0001>
module attributes {stable_mosaic.version = 11 : i64} {
  func.func @_rope_kernel(%arg0: i32, %arg1: i32, %arg2: memref<1x8x32xf32, #tpu.memory_space<vmem>>, %arg3: memref<32x32xf32, #tpu.memory_space<vmem>>, %arg4: memref<8x16xf32, #tpu.memory_space<vmem>>, %arg5: memref<8x16xf32, #tpu.memory_space<vmem>>, %arg6: memref<1x8x32xf32, #tpu.memory_space<vmem>>) attributes {dimension_semantics = [#tpu.dimension_semantics<parallel>, #tpu.dimension_semantics<parallel>], iteration_bounds = array<i64: 1, 2>, scalar_prefetch = 0 : i64, scratch_operands = 0 : i64, tpu.core_type = #tpu.core_type<tc>, window_params = [{transform_indices = @transform_0, window_bounds = array<i64: 1, 8, 32>}, {pipeline_mode = #tpu.pipeline_mode<synchronous>, transform_indices = @transform_1, window_bounds = array<i64: 32, 32>}, {transform_indices = @transform_2, window_bounds = array<i64: 8, 16>}, {transform_indices = @transform_3, window_bounds = array<i64: 8, 16>}, {transform_indices = @transform_4, window_bounds = array<i64: 1, 8, 32>}]} {
    %c0 = arith.constant 0 : index
    %c0_0 = arith.constant 0 : index
    %c0_1 = arith.constant 0 : index
    %0 = vector.load %arg2[%c0, %c0_0, %c0_1] : memref<1x8x32xf32, #tpu.memory_space<vmem>>, vector<1x8x32xf32>
    %1 = vector.shape_cast %0 : vector<1x8x32xf32> to vector<8x32xf32>
    %c0_2 = arith.constant 0 : index
    %c0_3 = arith.constant 0 : index
    %2 = vector.load %arg3[%c0_2, %c0_3] : memref<32x32xf32, #tpu.memory_space<vmem>>, vector<32x32xf32>
    %cst = arith.constant dense<0.000000e+00> : vector<8x32xf32>
    %3 = tpu.matmul %1, %2, %cst {dimension_numbers = #tpu.dot_dimension_numbers<[1], [0], [0], [1], [0, 0, 1, 1], [], []>, precision = #tpu.contract_precision<fp32>} : vector<8x32xf32>, vector<32x32xf32>, vector<8x32xf32> -> vector<8x32xf32>
    %4 = vector.extract_strided_slice %3 {offsets = [0, 0], sizes = [8, 16], strides = [1, 1]} : vector<8x32xf32> to vector<8x16xf32>
    %5 = vector.extract_strided_slice %3 {offsets = [0, 16], sizes = [8, 16], strides = [1, 1]} : vector<8x32xf32> to vector<8x16xf32>
    %c0_4 = arith.constant 0 : index
    %c0_5 = arith.constant 0 : index
    %6 = vector.load %arg4[%c0_4, %c0_5] : memref<8x16xf32, #tpu.memory_space<vmem>>, vector<8x16xf32>
    %c0_6 = arith.constant 0 : index
    %c0_7 = arith.constant 0 : index
    %7 = vector.load %arg5[%c0_6, %c0_7] : memref<8x16xf32, #tpu.memory_space<vmem>>, vector<8x16xf32>
    %8 = arith.mulf %4, %6 : vector<8x16xf32>
    %9 = arith.mulf %5, %7 : vector<8x16xf32>
    %10 = arith.subf %8, %9 : vector<8x16xf32>
    %c0_8 = arith.constant 0 : index
    %c0_9 = arith.constant 0 : index
    %c0_10 = arith.constant 0 : index
    %11 = vector.load %arg6[%c0_8, %c0_9, %c0_10] : memref<1x8x32xf32, #tpu.memory_space<vmem>>, vector<1x8x16xf32>
    %12 = vector.shape_cast %11 : vector<1x8x16xf32> to vector<8x16xf32>
    %13 = vector.shape_cast %10 : vector<8x16xf32> to vector<1x8x16xf32>
    tpu.vector_store %arg6[%c0_8, %c0_9, %c0_10], %13 {strides = array<i32>} : memref<1x8x32xf32, #tpu.memory_space<vmem>>, vector<1x8x16xf32>,
    %14 = arith.mulf %4, %7 : vector<8x16xf32>
    %15 = arith.mulf %5, %6 : vector<8x16xf32>
    %16 = arith.addf %14, %15 : vector<8x16xf32>
    %c0_11 = arith.constant 0 : index
    %c0_12 = arith.constant 0 : index
    %c16 = arith.constant 16 : index
    %17 = vector.load %arg6[%c0_11, %c0_12, %c16] : memref<1x8x32xf32, #tpu.memory_space<vmem>>, vector<1x8x16xf32>
    %18 = vector.shape_cast %17 : vector<1x8x16xf32> to vector<8x16xf32>
    %19 = vector.shape_cast %16 : vector<8x16xf32> to vector<1x8x16xf32>
    tpu.vector_store %arg6[%c0_11, %c0_12, %c16], %19 {strides = array<i32>} : memref<1x8x32xf32, #tpu.memory_space<vmem>>, vector<1x8x16xf32>,
    return
  }
  func.func @transform_0(%arg0: i32, %arg1: i32) -> (i32, i32, i32) {
    %c0_i32 = arith.constant 0 : i32
    %c0_i32_0 = arith.constant 0 : i32
    return %arg1, %arg0, %c0_i32 : i32, i32, i32
  }
  func.func @transform_1(%arg0: i32, %arg1: i32) -> (i32, i32) {
    %c0_i32 = arith.constant 0 : i32
    %c0_i32_0 = arith.constant 0 : i32
    %c0_i32_1 = arith.constant 0 : i32
    return %c0_i32, %c0_i32_0 : i32, i32
  }
  func.func @transform_2(%arg0: i32, %arg1: i32) -> (i32, i32) {
    %c0_i32 = arith.constant 0 : i32
    %c0_i32_0 = arith.constant 0 : i32
    return %arg0, %c0_i32 : i32, i32
  }
  func.func @transform_3(%arg0: i32, %arg1: i32) -> (i32, i32) {
    %c0_i32 = arith.constant 0 : i32
    %c0_i32_0 = arith.constant 0 : i32
    return %arg0, %c0_i32 : i32, i32
  }
  func.func @transform_4(%arg0: i32, %arg1: i32) -> (i32, i32, i32) {
    %c0_i32 = arith.constant 0 : i32
    %c0_i32_0 = arith.constant 0 : i32
    return %arg1, %arg0, %c0_i32 : i32, i32, i32
  }
}

</mosaic_0001>

<llo_original>
// kernel: tpu_custom_call.1
$region0: #{tpu_custom_call.1}
  #allocation0 [shape = 'u32[]', space=smem, size = 0x4, offset = 0x4, fixed_abs, tag = 'smem constant byte address 0x4 - core index']
  #allocation1 [shape = 'u32[144,128]{1,0:T(1,128)}', space=vmem, size = 0x12000, scoped, tag = 'internal scratch']
  %s0 = inlined_call_operand.hbm [shape: f32[2,8,32], index: 0, kind: input, shape index: {}]
  %s1 = inlined_call_operand.hbm [shape: f32[32,32], index: 1, kind: input, shape index: {}]
  %s2 = inlined_call_operand.hbm [shape: f32[8,16], index: 2, kind: input, shape index: {}]
  %s3 = inlined_call_operand.vmem [shape: f32[8,16], index: 3, kind: input, shape index: {}]
  %s4 = inlined_call_operand.hbm [shape: f32[2,8,32], index: 4, kind: output, shape index: {}]
  %s5 = sld [smem:[#allocation0]]
  $region61: #{tpu_custom_call.1} parent=0
    _
  %s7 = ssub.s32 1, %s5
  %s8 = scalar_select 0, %s7, %s5
  $region1: #{tpu_custom_call.1} parent=0
    #allocation2 [shape = 'u8[8192]{0}', space=vmem, size = 0x2000, scoped, tag = 'input window, operand 0']
    #allocation3 [shape = 's32[2]{0}', space=sflag, size = 0x8, scoped, tag = 'scoped memory for tpu_custom_call.1']
    #allocation4 [shape = 's32[2]{0}', space=sflag, size = 0x8, scoped, tag = 'scoped memory for tpu_custom_call.1']
    #allocation5 [shape = 'u8[16384]{0}', space=vmem, size = 0x4000, scoped, tag = 'input window, operand 1, single buffered']
    #allocation6 [shape = 's32[1]{0}', space=sflag, size = 0x4, scoped, tag = 'scoped memory for tpu_custom_call.1']
    #allocation7 [shape = 'u8[4096]{0}', space=vmem, size = 0x1000, scoped, tag = 'input window, operand 2, single buffered']
    #allocation8 [shape = 'u8[8192]{0}', space=vmem, size = 0x2000, scoped, tag = 'output window, operand 0']
    %9 = vsyncpa [#allocation3], 0
    %s10 = scalar_lea.sflag [#allocation3], 1
    %11 = vsyncpa %s10, 0
    %12 = vsyncpa [#allocation6], 0
    %13 = vsyncpa [#allocation4], 0
    %s14 = scalar_lea.sflag [#allocation4], 1
    %15 = vsyncpa %s14, 0
    loop: start=0, step=1, limit=4
    $region2: #{tpu_custom_call.1} parent=1 // loop_pre_header
      _
    $region3: #{tpu_custom_call.1} parent=1 // loop_header
      %s17 = sphi 0, %s21
      %p18 = scmp.ge.s32.totalorder %s17, 4
      %s24 = sphi 0, %s36
      %s25 = sphi 0, %s32
      %s26 = sphi 0, %s24
      %s27 = sphi 0, %s25
      %s28 = sphi 0, %s26
      %s29 = sphi 0, %s27
      %s41 = sphi 0, %s43
      %s44 = sphi 0, %s41
      %s45 = sphi 0, %s44
      %s61 = sphi 0, %s45
      %s65 = sphi 0, %s65
      %s67 = sphi 0, %s65
      %s68 = sphi 0, %s67
      %s82 = sphi 0, %s68
      %s88 = sphi 0, %s90
      %s91 = sphi 0, %s88
      %s92 = sphi 0, %s91
      %s108 = sphi 0, %s92
      %s114 = sphi 0, %s116
      %s117 = sphi 0, %s114
      %s118 = sphi 0, %s117
      %s134 = sphi 0, %s118
      %s142 = sphi 0, %s144
      %s145 = sphi 0, %s142
      %s146 = sphi 0, %s145
      %s162 = sphi 0, %s146
    $region4: #{tpu_custom_call.1} parent=1 // loop_header_branch
      %20 = sbr.rel (%p18) target = $region8
    $region5: #{tpu_custom_call.1} parent=1 // loop_body
      %s22 = ssub.s32 %s17, 1
      %s23 = ssub.s32 %s17, 2
      %s30 = sadd.s32 1, %s25
      %p31 = scmp.ge.s32.totalorder %s30, 2
      %s32 = scalar_select %p31, 0, %s30
      %s33 = sadd.s32 1, %s24
      %s34 = scalar_select %p31, %s33, %s24
      %p35 = scmp.ge.s32.totalorder %s34, 1
      %s36 = scalar_select %p35, 0, %s34
      %s37 = ssub.s32 %s25, %s32
      %s38 = ssub.s32 %s24, %s36
      %s39 = sor.u32 %s37, %s38
      %p40 = scmp.eq.s32.totalorder %s39, 0
      %s42 = sadd.s32 %s41, 1
      %s43 = scalar_select %p40, %s41, %s42
      %p46 = pneg %p40
      %p47 = scmp.eq.s32.totalorder %s17, 1
      %p48 = por %p46, %p47
      %p49 = scmp.ne.s32.totalorder %s41, %s44
      %p50 = scmp.eq.s32.totalorder %s17, 0
      %p51 = por %p49, %p50
      %p52 = scmp.ne.s32.totalorder %s41, %s44
      %p53 = scmp.eq.s32.totalorder %s22, 1
      %p54 = por %p52, %p53
      %p55 = scmp.ne.s32.totalorder %s44, %s45
      %p56 = scmp.eq.s32.totalorder %s22, 0
      %p57 = por %p55, %p56
      %p58 = scmp.ne.s32.totalorder %s44, %s45
      %p59 = scmp.eq.s32.totalorder %s23, 1
      %p60 = por %p58, %p59
      %p62 = scmp.ne.s32.totalorder %s45, %s61
      %p63 = scmp.eq.s32.totalorder %s23, 0
      %p64 = por %p62, %p63
      %s66 = sadd.s32 %s65, 1
      %p69 = scmp.eq.s32.totalorder %s17, 1
      %p70 = scmp.ne.s32.totalorder %s65, %s67
      %p71 = scmp.eq.s32.totalorder %s17, 0
      %p72 = por %p70, %p71
      %p73 = scmp.ne.s32.totalorder %s65, %s67
      %p74 = scmp.eq.s32.totalorder %s22, 1
      %p75 = por %p73, %p74
      %p76 = scmp.ne.s32.totalorder %s67, %s68
      %p77 = scmp.eq.s32.totalorder %s22, 0
      %p78 = por %p76, %p77
      %p79 = scmp.ne.s32.totalorder %s67, %s68
      %p80 = scmp.eq.s32.totalorder %s23, 1
      %p81 = por %p79, %p80
      %p83 = scmp.ne.s32.totalorder %s68, %s82
      %p84 = scmp.eq.s32.totalorder %s23, 0
      %p85 = por %p83, %p84
      %s86 = ssub.s32 %s24, %s36
      %p87 = scmp.eq.s32.totalorder %s86, 0
      %s89 = sadd.s32 %s88, 1
      %s90 = scalar_select %p87, %s88, %s89
      %p93 = pneg %p87
      %p94 = scmp.eq.s32.totalorder %s17, 1
      %p95 = por %p93, %p94
      %p96 = scmp.ne.s32.totalorder %s88, %s91
      %p97 = scmp.eq.s32.totalorder %s17, 0
      %p98 = por %p96, %p97
      %p99 = scmp.ne.s32.totalorder %s88, %s91
      %p100 = scmp.eq.s32.totalorder %s22, 1
      %p101 = por %p99, %p100
      %p102 = scmp.ne.s32.totalorder %s91, %s92
      %p103 = scmp.eq.s32.totalorder %s22, 0
      %p104 = por %p102, %p103
      %p105 = scmp.ne.s32.totalorder %s91, %s92
      %p106 = scmp.eq.s32.totalorder %s23, 1
      %p107 = por %p105, %p106
      %p109 = scmp.ne.s32.totalorder %s92, %s108
      %p110 = scmp.eq.s32.totalorder %s23, 0
      %p111 = por %p109, %p110
      %s112 = ssub.s32 %s24, %s36
      %p113 = scmp.eq.s32.totalorder %s112, 0
      %s115 = sadd.s32 %s114, 1
      %s116 = scalar_select %p113, %s114, %s115
      %p119 = pneg %p113
      %p120 = scmp.eq.s32.totalorder %s17, 1
      %p121 = por %p119, %p120
      %p122 = scmp.ne.s32.totalorder %s114, %s117
      %p123 = scmp.eq.s32.totalorder %s17, 0
      %p124 = por %p122, %p123
      %p125 = scmp.ne.s32.totalorder %s114, %s117
      %p126 = scmp.eq.s32.totalorder %s22, 1
      %p127 = por %p125, %p126
      %p128 = scmp.ne.s32.totalorder %s117, %s118
      %p129 = scmp.eq.s32.totalorder %s22, 0
      %p130 = por %p128, %p129
      %p131 = scmp.ne.s32.totalorder %s117, %s118
      %p132 = scmp.eq.s32.totalorder %s23, 1
      %p133 = por %p131, %p132
      %p135 = scmp.ne.s32.totalorder %s118, %s134
      %p136 = scmp.eq.s32.totalorder %s23, 0
      %p137 = por %p135, %p136
      %s138 = ssub.s32 %s25, %s32
      %s139 = ssub.s32 %s24, %s36
      %s140 = sor.u32 %s138, %s139
      %p141 = scmp.eq.s32.totalorder %s140, 0
      %s143 = sadd.s32 %s142, 1
      %s144 = scalar_select %p141, %s142, %s143
      %p147 = pneg %p141
      %p148 = scmp.eq.s32.totalorder %s17, 1
      %p149 = por %p147, %p148
      %p150 = scmp.ne.s32.totalorder %s142, %s145
      %p151 = scmp.eq.s32.totalorder %s17, 0
      %p152 = por %p150, %p151
      %p153 = scmp.ne.s32.totalorder %s142, %s145
      %p154 = scmp.eq.s32.totalorder %s22, 1
      %p155 = por %p153, %p154
      %p156 = scmp.ne.s32.totalorder %s145, %s146
      %p157 = scmp.eq.s32.totalorder %s22, 0
      %p158 = por %p156, %p157
      %p159 = scmp.ne.s32.totalorder %s145, %s146
      %p160 = scmp.eq.s32.totalorder %s23, 1
      %p161 = por %p159, %p160
      %p163 = scmp.ne.s32.totalorder %s146, %s162
      %p164 = scmp.eq.s32.totalorder %s23, 0
      %p165 = por %p163, %p164
      %p166 = scmp.le.s32.totalorder 1, %s17
      %p167 = scmp.lt.s32.totalorder %s17, 3
      %p168 = pnand %p166, %p167
      %p169 = pneg %p168
      // Predicated region
      $region9: #{tpu_custom_call.1} parent=5 // pred_check
        _
      $region10: #{tpu_custom_call.1} parent=5 // pred_check_branch
        %171 = sbr.rel (%p168) target = $region12
      $region11: #{tpu_custom_call.1} parent=5 // pred_region
        %s172 = ssub.s32 %s17, 1
        // Predicated region
        $region13: #{tpu_custom_call.1} parent=11 // pred_check
          %p173 = pneg %p78
        $region14: #{tpu_custom_call.1} parent=11 // pred_check_branch
          %175 = sbr.rel (%p173) target = $region16
        $region15: #{tpu_custom_call.1} parent=11 // pred_region
          %s177 = ssub.s32 512, 512
          %178 = vsyncadd [#allocation6], %s177
          %s179 = sshll.u32 [#allocation5], 4
          %s180 = int_to_ptr.vmem [resolvable:$true] %s179
          %185 = dma.hbm_to_vmem [thread:$0]  %s1, 512, %s180, [#allocation6], 128, 128, 8
        $region16: #{tpu_custom_call.1} parent=11 // pred_fallthru
          _
        // Predicated region
        $region17: #{tpu_custom_call.1} parent=11 // pred_check
          %p186 = pneg %p104
        $region18: #{tpu_custom_call.1} parent=11 // pred_check_branch
          %188 = sbr.rel (%p186) target = $region20
        $region19: #{tpu_custom_call.1} parent=11 // pred_region
          %s190 = ssub.s32 128, 128
          %191 = vsyncadd [#allocation6], %s190
          %s192 = smul.addr %s26, 128
          %s193 = scalar_lea.hbm %s2, %s192
          %s195 = sshll.u32 [#allocation7], 4
          %s196 = int_to_ptr.vmem [resolvable:$true] %s195
          %198 = dma.hbm_to_vmem [thread:$0]  %s193, 128, %s196, [#allocation6]
        $region20: #{tpu_custom_call.1} parent=11 // pred_fallthru
          _
        // Predicated region
        $region21: #{tpu_custom_call.1} parent=11 // pred_check
          %p199 = pneg %p130
        $region22: #{tpu_custom_call.1} parent=11 // pred_check_branch
          %201 = sbr.rel (%p199) target = $region24
        $region23: #{tpu_custom_call.1} parent=11 // pred_region
          %p202 = scmp.lt.s32.totalorder %s26, 0
          %s203 = scalar_select %p202, %s26, 0
          %s204 = smul.addr %s203, 8
          %s205 = scalar_lea.vmem %s3, %s204
        $region24: #{tpu_custom_call.1} parent=11 // pred_fallthru
          _
      $region12: #{tpu_custom_call.1} parent=5 // pred_fallthru
        _
      %p206 = scmp.lt.s32.totalorder %s17, 2
      // Predicated region
      $region25: #{tpu_custom_call.1} parent=5 // pred_check
        %p207 = pneg %p206
      $region26: #{tpu_custom_call.1} parent=5 // pred_check_branch
        %209 = sbr.rel (%p207) target = $region28
      $region27: #{tpu_custom_call.1} parent=5 // pred_region
        // Predicated region
        $region29: #{tpu_custom_call.1} parent=27 // pred_check
          %p210 = pneg %p51
        $region30: #{tpu_custom_call.1} parent=27 // pred_check_branch
          %212 = sbr.rel (%p210) target = $region32
        $region31: #{tpu_custom_call.1} parent=27 // pred_region
          %s213 = sand.u32 %s41, 1
          %s214 = scalar_lea.sflag [#allocation3], %s213
          %s215 = sand.u32 %s41, 1
          %s216 = smul.addr %s215, 8
          %s217 = scalar_lea.vmem [#allocation2], %s216
          %s219 = ssub.s32 128, 128
          %220 = vsyncadd %s214, %s219
          %s221 = sadd.s32 %s24, %s25
          %s222 = smul.addr %s221, 128
          %s223 = scalar_lea.hbm %s0, %s222
          %s225 = sshll.u32 %s217, 4
          %s226 = int_to_ptr.vmem [resolvable:$true] %s225
          %228 = dma.hbm_to_vmem [thread:$0]  %s223, 128, %s226, %s214
        $region32: #{tpu_custom_call.1} parent=27 // pred_fallthru
          _
      $region28: #{tpu_custom_call.1} parent=5 // pred_fallthru
        _
      %p229 = scmp.le.s32.totalorder 1, %s17
      %p230 = scmp.lt.s32.totalorder %s17, 3
      %p231 = pnand %p229, %p230
      %p232 = pneg %p231
      // Predicated region
      $region33: #{tpu_custom_call.1} parent=5 // pred_check
        _
      $region34: #{tpu_custom_call.1} parent=5 // pred_check_branch
        %234 = sbr.rel (%p231) target = $region36
      $region35: #{tpu_custom_call.1} parent=5 // pred_region
        %s235 = ssub.s32 %s17, 1
        %s236 = sand.u32 %s44, 1
        %s237 = scalar_lea.sflag [#allocation3], %s236
        %s238 = sand.u32 %s44, 1
        %s239 = smul.addr %s238, 8
        %s240 = scalar_lea.vmem [#allocation2], %s239
        // Predicated region
        $region37: #{tpu_custom_call.1} parent=35 // pred_check
          %p241 = pneg %p57
        $region38: #{tpu_custom_call.1} parent=35 // pred_check_branch
          %243 = sbr.rel (%p241) target = $region40
        $region39: #{tpu_custom_call.1} parent=35 // pred_region
          %244 = dma.done %s237, 128
        $region40: #{tpu_custom_call.1} parent=35 // pred_fallthru
          _
        // Predicated region
        $region41: #{tpu_custom_call.1} parent=35 // pred_check
          %p245 = pneg %p78
        $region42: #{tpu_custom_call.1} parent=35 // pred_check_branch
          %247 = sbr.rel (%p245) target = $region44
        $region43: #{tpu_custom_call.1} parent=35 // pred_region
          %248 = dma.done [#allocation6], 512
        $region44: #{tpu_custom_call.1} parent=35 // pred_fallthru
          _
        // Predicated region
        $region45: #{tpu_custom_call.1} parent=35 // pred_check
          %p249 = pneg %p104
        $region46: #{tpu_custom_call.1} parent=35 // pred_check_branch
          %251 = sbr.rel (%p249) target = $region48
        $region47: #{tpu_custom_call.1} parent=35 // pred_region
          %252 = dma.done [#allocation6], 128
        $region48: #{tpu_custom_call.1} parent=35 // pred_fallthru
          _
        %s253 = sand.u32 %s44, 1
        %s254 = scalar_lea.sflag [#allocation3], %s253
        %s255 = sand.u32 %s44, 1
        %s256 = smul.addr %s255, 8
        %s257 = scalar_lea.vmem [#allocation2], %s256
        %p258 = pneg %p57
        %p259 = pneg %p54
        %p260 = pneg %p78
        %p261 = pneg %p75
        %p262 = pneg %p104
        %p263 = pneg %p101
        %p264 = scmp.lt.s32.totalorder %s26, 0
        %s265 = scalar_select %p264, %s26, 0
        %s266 = smul.addr %s265, 8
        %s267 = scalar_lea.vmem %s3, %s266
        %p268 = pneg %p130
        %p269 = pneg %p127
        %p270 = pneg %p158
        %p271 = pneg %p155
        %s272 = sand.u32 %s145, 1
        %s273 = scalar_lea.sflag [#allocation4], %s272
        %s274 = sand.u32 %s145, 1
        %s275 = smul.addr %s274, 8
        %s276 = scalar_lea.vmem [#allocation8], %s275
        %p277 = scmp.lt.s32.totalorder %s26, 0
        %s278 = scalar_select %p277, %s26, 0
        %s279 = smul.addr %s278, 8
        %s280 = scalar_lea.vmem %s3, %s279
        %v281 = vld [vmem:[%s240] sm:$0xff]
        %v282 = vld [vmem:[#allocation5] sm:$0xff]
        %v283 = vld [vmem:[#allocation5 + $0x8] sm:$0xff]
        %v284 = vld [vmem:[#allocation5 + $0x10] sm:$0xff]
        %v285 = vld [vmem:[#allocation5 + $0x18] sm:$0xff]
        %vm286 = vcmask 261120
        %v288 = vsel %vm286, %v281, 0
        %290 = vmatprep.subr.mxu0 0.0
        %v291 = vand.u32 %v282, 4294901760
        %292 = vmatpush1.msra.mxu0 %v291
        %293 = vmatprep.subr.mxu0 0.0
        %v294 = vand.u32 %v283, 4294901760
        %295 = vmatpush1.msra.mxu0 %v294
        %296 = vmatprep.subr.mxu0 0.0
        %v297 = vand.u32 %v284, 4294901760
        %298 = vmatpush1.msra.mxu0 %v297
        %299 = vmatprep.subr.mxu0 0.0
        %v300 = vand.u32 %v285, 4294901760
        %301 = vmatpush1.msra.mxu0 %v300
        %302 = vmatprep.subr.mxu0 0.0
        %303 = vmatpush1.msra.mxu0 0.0
        %304 = vmatprep.subr.mxu0 0.0
        %305 = vmatpush1.msra.mxu0 0.0
        %306 = vmatprep.subr.mxu0 0.0
        %307 = vmatpush1.msra.mxu0 0.0
        %308 = vmatprep.subr.mxu0 0.0
        %309 = vmatpush1.msra.mxu0 0.0
        %310 = vmatprep.subr.mxu0 0.0
        %311 = vmatpush1.msra.mxu0 0.0
        %312 = vmatprep.subr.mxu0 0.0
        %313 = vmatpush1.msra.mxu0 0.0
        %314 = vmatprep.subr.mxu0 0.0
        %315 = vmatpush1.msra.mxu0 0.0
        %316 = vmatprep.subr.mxu0 0.0
        %317 = vmatpush1.msra.mxu0 0.0
        %318 = vmatprep.subr.mxu0 0.0
        %319 = vmatpush1.msra.mxu0 0.0
        %320 = vmatprep.subr.mxu0 0.0
        %321 = vmatpush1.msra.mxu0 0.0
        %322 = vmatprep.subr.mxu0 0.0
        %323 = vmatpush1.msra.mxu0 0.0
        %324 = vmatprep.subr.mxu0 0.0
        %325 = vmatpush1.msra.mxu0 0.0
        %326 = vmatprep.subr.mxu0 0.0
        %327 = vmatpush1.msra.mxu0 0.0
        %328 = vmatprep.subr.mxu0 0.0
        %329 = vmatpush1.msra.mxu0 0.0
        %330 = vmatprep.subr.mxu0 0.0
        %331 = vmatpush1.msra.mxu0 0.0
        %332 = vmatprep.subr.mxu0 0.0
        %333 = vmatpush1.msra.mxu0 0.0
        %334 = vmatprep.subr.mxu0 0.0
        %335 = vmatpush1.msra.mxu0 0.0
        %336 = vmatprep.subr.mxu0 0.0
        %337 = vmatpush1.msra.mxu0 0.0
        %338 = vmatprep.subr.mxu0 0.0
        %339 = vmatpush1.msra.mxu0 0.0
        %340 = vmatprep.subr.mxu0 0.0
        %341 = vmatpush1.msra.mxu0 0.0
        %342 = vmatprep.subr.mxu0 0.0
        %343 = vmatpush1.msra.mxu0 0.0
        %344 = vmatprep.subr.mxu0 0.0
        %345 = vmatpush1.msra.mxu0 0.0
        %346 = vmatprep.subr.mxu0 0.0
        %347 = vmatpush1.msra.mxu0 0.0
        %348 = vmatprep.subr.mxu0 0.0
        %349 = vmatpush1.msra.mxu0 0.0
        %350 = vmatprep.subr.mxu0 0.0
        %351 = vmatpush1.msra.mxu0 0.0
        %352 = vmatprep.subr.mxu0 0.0
        %353 = vmatpush1.msra.mxu0 0.0
        %354 = vmatprep.subr.mxu0 0.0
        %355 = vmatpush1.msra.mxu0 0.0
        %356 = vmatprep.subr.mxu0 0.0
        %357 = vmatpush1.msra.mxu0 0.0
        %358 = vmatprep.mubr.f32.mxu0 0.0
        %v359 = vand.u32 %v288, 4294901760
        %v360 = vsub.f32 %v288, %v359
        %v361 = vand.u32 %v360, 4294901760
        %v362 = vsub.f32 %v360, %v361
        %v363 = vand.u32 %v362, 4294901760
        %364 = vmatmul.mubr.f32.gmra.mrb[0].mxu0 %v363
        %v365 = vpop.f32.mrb[0].mxu0
        %v366 = vadd.f32 0.0, %v365
        %v367 = vpop.f32.mrb[0].mxu0
        %368 = vdwg.mxu0
        %369 = vmatprep.subr.mxu0 0.0
        %v370 = vand.u32 %v282, 4294901760
        %v371 = vsub.f32 %v282, %v370
        %v372 = vand.u32 %v371, 4294901760
        %v373 = vsub.f32 %v371, %v372
        %v374 = vand.u32 %v373, 4294901760
        %375 = vmatpush1.msra.mxu0 %v374
        %376 = vmatprep.subr.mxu0 0.0
        %v377 = vand.u32 %v283, 4294901760
        %v378 = vsub.f32 %v283, %v377
        %v379 = vand.u32 %v378, 4294901760
        %v380 = vsub.f32 %v378, %v379
        %v381 = vand.u32 %v380, 4294901760
        %382 = vmatpush1.msra.mxu0 %v381
        %383 = vmatprep.subr.mxu0 0.0
        %v384 = vand.u32 %v284, 4294901760
        %v385 = vsub.f32 %v284, %v384
        %v386 = vand.u32 %v385, 4294901760
        %v387 = vsub.f32 %v385, %v386
        %v388 = vand.u32 %v387, 4294901760
        %389 = vmatpush1.msra.mxu0 %v388
        %390 = vmatprep.subr.mxu0 0.0
        %v391 = vand.u32 %v285, 4294901760
        %v392 = vsub.f32 %v285, %v391
        %v393 = vand.u32 %v392, 4294901760
        %v394 = vsub.f32 %v392, %v393
        %v395 = vand.u32 %v394, 4294901760
        %396 = vmatpush1.msra.mxu0 %v395
        %397 = vmatprep.subr.mxu0 0.0
        %398 = vmatpush1.msra.mxu0 0.0
        %399 = vmatprep.subr.mxu0 0.0
        %400 = vmatpush1.msra.mxu0 0.0
        %401 = vmatprep.subr.mxu0 0.0
        %402 = vmatpush1.msra.mxu0 0.0
        %403 = vmatprep.subr.mxu0 0.0
        %404 = vmatpush1.msra.mxu0 0.0
        %405 = vmatprep.subr.mxu0 0.0
        %406 = vmatpush1.msra.mxu0 0.0
        %407 = vmatprep.subr.mxu0 0.0
        %408 = vmatpush1.msra.mxu0 0.0
        %409 = vmatprep.subr.mxu0 0.0
        %410 = vmatpush1.msra.mxu0 0.0
        %411 = vmatprep.subr.mxu0 0.0
        %412 = vmatpush1.msra.mxu0 0.0
        %413 = vmatprep.subr.mxu0 0.0
        %414 = vmatpush1.msra.mxu0 0.0
        %415 = vmatprep.subr.mxu0 0.0
        %416 = vmatpush1.msra.mxu0 0.0
        %417 = vmatprep.subr.mxu0 0.0
        %418 = vmatpush1.msra.mxu0 0.0
        %419 = vmatprep.subr.mxu0 0.0
        %420 = vmatpush1.msra.mxu0 0.0
        %421 = vmatprep.subr.mxu0 0.0
        %422 = vmatpush1.msra.mxu0 0.0
        %423 = vmatprep.subr.mxu0 0.0
        %424 = vmatpush1.msra.mxu0 0.0
        %425 = vmatprep.subr.mxu0 0.0
        %426 = vmatpush1.msra.mxu0 0.0
        %427 = vmatprep.subr.mxu0 0.0
        %428 = vmatpush1.msra.mxu0 0.0
        %429 = vmatprep.subr.mxu0 0.0
        %430 = vmatpush1.msra.mxu0 0.0
        %431 = vmatprep.subr.mxu0 0.0
        %432 = vmatpush1.msra.mxu0 0.0
        %433 = vmatprep.subr.mxu0 0.0
        %434 = vmatpush1.msra.mxu0 0.0
        %435 = vmatprep.subr.mxu0 0.0
        %436 = vmatpush1.msra.mxu0 0.0
        %437 = vmatprep.subr.mxu0 0.0
        %438 = vmatpush1.msra.mxu0 0.0
        %439 = vmatprep.subr.mxu0 0.0
        %440 = vmatpush1.msra.mxu0 0.0
        %441 = vmatprep.subr.mxu0 0.0
        %442 = vmatpush1.msra.mxu0 0.0
        %443 = vmatprep.subr.mxu0 0.0
        %444 = vmatpush1.msra.mxu0 0.0
        %445 = vmatprep.subr.mxu0 0.0
        %446 = vmatpush1.msra.mxu0 0.0
        %447 = vmatprep.subr.mxu0 0.0
        %448 = vmatpush1.msra.mxu0 0.0
        %449 = vmatprep.subr.mxu0 0.0
        %450 = vmatpush1.msra.mxu0 0.0
        %451 = vmatprep.subr.mxu0 0.0
        %452 = vmatpush1.msra.mxu0 0.0
        %453 = vmatprep.mubr.f32.mxu0 0.0
        %v454 = vand.u32 %v288, 4294901760
        %455 = vmatmul.mubr.f32.gmra.mrb[0].mxu0 %v454
        %v456 = vpop.f32.mrb[0].mxu0
        %v457 = vadd.f32 %v366, %v456
        %v458 = vpop.f32.mrb[0].mxu0
        %459 = vdwg.mxu0
        %460 = vmatprep.subr.mxu0 0.0
        %v461 = vand.u32 %v282, 4294901760
        %v462 = vsub.f32 %v282, %v461
        %463 = vmatpush1.msra.mxu0 %v462
        %464 = vmatprep.subr.mxu0 0.0
        %v465 = vand.u32 %v283, 4294901760
        %v466 = vsub.f32 %v283, %v465
        %467 = vmatpush1.msra.mxu0 %v466
        %468 = vmatprep.subr.mxu0 0.0
        %v469 = vand.u32 %v284, 4294901760
        %v470 = vsub.f32 %v284, %v469
        %471 = vmatpush1.msra.mxu0 %v470
        %472 = vmatprep.subr.mxu0 0.0
        %v473 = vand.u32 %v285, 4294901760
        %v474 = vsub.f32 %v285, %v473
        %475 = vmatpush1.msra.mxu0 %v474
        %476 = vmatprep.subr.mxu0 0.0
        %477 = vmatpush1.msra.mxu0 0.0
        %478 = vmatprep.subr.mxu0 0.0
        %479 = vmatpush1.msra.mxu0 0.0
        %480 = vmatprep.subr.mxu0 0.0
        %481 = vmatpush1.msra.mxu0 0.0
        %482 = vmatprep.subr.mxu0 0.0
        %483 = vmatpush1.msra.mxu0 0.0
        %484 = vmatprep.subr.mxu0 0.0
        %485 = vmatpush1.msra.mxu0 0.0
        %486 = vmatprep.subr.mxu0 0.0
        %487 = vmatpush1.msra.mxu0 0.0
        %488 = vmatprep.subr.mxu0 0.0
        %489 = vmatpush1.msra.mxu0 0.0
        %490 = vmatprep.subr.mxu0 0.0
        %491 = vmatpush1.msra.mxu0 0.0
        %492 = vmatprep.subr.mxu0 0.0
        %493 = vmatpush1.msra.mxu0 0.0
        %494 = vmatprep.subr.mxu0 0.0
        %495 = vmatpush1.msra.mxu0 0.0
        %496 = vmatprep.subr.mxu0 0.0
        %497 = vmatpush1.msra.mxu0 0.0
        %498 = vmatprep.subr.mxu0 0.0
        %499 = vmatpush1.msra.mxu0 0.0
        %500 = vmatprep.subr.mxu0 0.0
        %501 = vmatpush1.msra.mxu0 0.0
        %502 = vmatprep.subr.mxu0 0.0
        %503 = vmatpush1.msra.mxu0 0.0
        %504 = vmatprep.subr.mxu0 0.0
        %505 = vmatpush1.msra.mxu0 0.0
        %506 = vmatprep.subr.mxu0 0.0
        %507 = vmatpush1.msra.mxu0 0.0
        %508 = vmatprep.subr.mxu0 0.0
        %509 = vmatpush1.msra.mxu0 0.0
        %510 = vmatprep.subr.mxu0 0.0
        %511 = vmatpush1.msra.mxu0 0.0
        %512 = vmatprep.subr.mxu0 0.0
        %513 = vmatpush1.msra.mxu0 0.0
        %514 = vmatprep.subr.mxu0 0.0
        %515 = vmatpush1.msra.mxu0 0.0
        %516 = vmatprep.subr.mxu0 0.0
        %517 = vmatpush1.msra.mxu0 0.0
        %518 = vmatprep.subr.mxu0 0.0
        %519 = vmatpush1.msra.mxu0 0.0
        %520 = vmatprep.subr.mxu0 0.0
        %521 = vmatpush1.msra.mxu0 0.0
        %522 = vmatprep.subr.mxu0 0.0
        %523 = vmatpush1.msra.mxu0 0.0
        %524 = vmatprep.subr.mxu0 0.0
        %525 = vmatpush1.msra.mxu0 0.0
        %526 = vmatprep.subr.mxu0 0.0
        %527 = vmatpush1.msra.mxu0 0.0
        %528 = vmatprep.subr.mxu0 0.0
        %529 = vmatpush1.msra.mxu0 0.0
        %530 = vmatprep.subr.mxu0 0.0
        %531 = vmatpush1.msra.mxu0 0.0
        %532 = vmatprep.mubr.f32.mxu0 0.0
        %v533 = vand.u32 %v288, 4294901760
        %v534 = vsub.f32 %v288, %v533
        %535 = vmatmul.mubr.f32.gmra.mrb[0].mxu0 %v534
        %v536 = vpop.f32.mrb[0].mxu0
        %v537 = vadd.f32 %v457, %v536
        %v538 = vpop.f32.mrb[0].mxu0
        %539 = vdwg.mxu0
        %540 = vmatprep.subr.mxu0 0.0
        %v541 = vand.u32 %v282, 4294901760
        %542 = vmatpush1.msra.mxu0 %v541
        %543 = vmatprep.subr.mxu0 0.0
        %v544 = vand.u32 %v283, 4294901760
        %545 = vmatpush1.msra.mxu0 %v544
        %546 = vmatprep.subr.mxu0 0.0
        %v547 = vand.u32 %v284, 4294901760
        %548 = vmatpush1.msra.mxu0 %v547
        %549 = vmatprep.subr.mxu0 0.0
        %v550 = vand.u32 %v285, 4294901760
        %551 = vmatpush1.msra.mxu0 %v550
        %552 = vmatprep.subr.mxu0 0.0
        %553 = vmatpush1.msra.mxu0 0.0
        %554 = vmatprep.subr.mxu0 0.0
        %555 = vmatpush1.msra.mxu0 0.0
        %556 = vmatprep.subr.mxu0 0.0
        %557 = vmatpush1.msra.mxu0 0.0
        %558 = vmatprep.subr.mxu0 0.0
        %559 = vmatpush1.msra.mxu0 0.0
        %560 = vmatprep.subr.mxu0 0.0
        %561 = vmatpush1.msra.mxu0 0.0
        %562 = vmatprep.subr.mxu0 0.0
        %563 = vmatpush1.msra.mxu0 0.0
        %564 = vmatprep.subr.mxu0 0.0
        %565 = vmatpush1.msra.mxu0 0.0
        %566 = vmatprep.subr.mxu0 0.0
        %567 = vmatpush1.msra.mxu0 0.0
        %568 = vmatprep.subr.mxu0 0.0
        %569 = vmatpush1.msra.mxu0 0.0
        %570 = vmatprep.subr.mxu0 0.0
        %571 = vmatpush1.msra.mxu0 0.0
        %572 = vmatprep.subr.mxu0 0.0
        %573 = vmatpush1.msra.mxu0 0.0
        %574 = vmatprep.subr.mxu0 0.0
        %575 = vmatpush1.msra.mxu0 0.0
        %576 = vmatprep.subr.mxu0 0.0
        %577 = vmatpush1.msra.mxu0 0.0
        %578 = vmatprep.subr.mxu0 0.0
        %579 = vmatpush1.msra.mxu0 0.0
        %580 = vmatprep.subr.mxu0 0.0
        %581 = vmatpush1.msra.mxu0 0.0
        %582 = vmatprep.subr.mxu0 0.0
        %583 = vmatpush1.msra.mxu0 0.0
        %584 = vmatprep.subr.mxu0 0.0
        %585 = vmatpush1.msra.mxu0 0.0
        %586 = vmatprep.subr.mxu0 0.0
        %587 = vmatpush1.msra.mxu0 0.0
        %588 = vmatprep.subr.mxu0 0.0
        %589 = vmatpush1.msra.mxu0 0.0
        %590 = vmatprep.subr.mxu0 0.0
        %591 = vmatpush1.msra.mxu0 0.0
        %592 = vmatprep.subr.mxu0 0.0
        %593 = vmatpush1.msra.mxu0 0.0
        %594 = vmatprep.subr.mxu0 0.0
        %595 = vmatpush1.msra.mxu0 0.0
        %596 = vmatprep.subr.mxu0 0.0
        %597 = vmatpush1.msra.mxu0 0.0
        %598 = vmatprep.subr.mxu0 0.0
        %599 = vmatpush1.msra.mxu0 0.0
        %600 = vmatprep.subr.mxu0 0.0
        %601 = vmatpush1.msra.mxu0 0.0
        %602 = vmatprep.subr.mxu0 0.0
        %603 = vmatpush1.msra.mxu0 0.0
        %604 = vmatprep.subr.mxu0 0.0
        %605 = vmatpush1.msra.mxu0 0.0
        %606 = vmatprep.subr.mxu0 0.0
        %607 = vmatpush1.msra.mxu0 0.0
        %608 = vmatprep.mubr.f32.mxu0 0.0
        %v609 = vand.u32 %v288, 4294901760
        %v610 = vsub.f32 %v288, %v609
        %v611 = vand.u32 %v610, 4294901760
        %612 = vmatmul.mubr.f32.gmra.mrb[0].mxu0 %v611
        %v613 = vpop.f32.mrb[0].mxu0
        %v614 = vadd.f32 %v537, %v613
        %v615 = vpop.f32.mrb[0].mxu0
        %616 = vdwg.mxu0
        %617 = vmatprep.subr.mxu0 0.0
        %v618 = vand.u32 %v282, 4294901760
        %v619 = vsub.f32 %v282, %v618
        %v620 = vand.u32 %v619, 4294901760
        %621 = vmatpush1.msra.mxu0 %v620
        %622 = vmatprep.subr.mxu0 0.0
        %v623 = vand.u32 %v283, 4294901760
        %v624 = vsub.f32 %v283, %v623
        %v625 = vand.u32 %v624, 4294901760
        %626 = vmatpush1.msra.mxu0 %v625
        %627 = vmatprep.subr.mxu0 0.0
        %v628 = vand.u32 %v284, 4294901760
        %v629 = vsub.f32 %v284, %v628
        %v630 = vand.u32 %v629, 4294901760
        %631 = vmatpush1.msra.mxu0 %v630
        %632 = vmatprep.subr.mxu0 0.0
        %v633 = vand.u32 %v285, 4294901760
        %v634 = vsub.f32 %v285, %v633
        %v635 = vand.u32 %v634, 4294901760
        %636 = vmatpush1.msra.mxu0 %v635
        %637 = vmatprep.subr.mxu0 0.0
        %638 = vmatpush1.msra.mxu0 0.0
        %639 = vmatprep.subr.mxu0 0.0
        %640 = vmatpush1.msra.mxu0 0.0
        %641 = vmatprep.subr.mxu0 0.0
        %642 = vmatpush1.msra.mxu0 0.0
        %643 = vmatprep.subr.mxu0 0.0
        %644 = vmatpush1.msra.mxu0 0.0
        %645 = vmatprep.subr.mxu0 0.0
        %646 = vmatpush1.msra.mxu0 0.0
        %647 = vmatprep.subr.mxu0 0.0
        %648 = vmatpush1.msra.mxu0 0.0
        %649 = vmatprep.subr.mxu0 0.0
        %650 = vmatpush1.msra.mxu0 0.0
        %651 = vmatprep.subr.mxu0 0.0
        %652 = vmatpush1.msra.mxu0 0.0
        %653 = vmatprep.subr.mxu0 0.0
        %654 = vmatpush1.msra.mxu0 0.0
        %655 = vmatprep.subr.mxu0 0.0
        %656 = vmatpush1.msra.mxu0 0.0
        %657 = vmatprep.subr.mxu0 0.0
        %658 = vmatpush1.msra.mxu0 0.0
        %659 = vmatprep.subr.mxu0 0.0
        %660 = vmatpush1.msra.mxu0 0.0
        %661 = vmatprep.subr.mxu0 0.0
        %662 = vmatpush1.msra.mxu0 0.0
        %663 = vmatprep.subr.mxu0 0.0
        %664 = vmatpush1.msra.mxu0 0.0
        %665 = vmatprep.subr.mxu0 0.0
        %666 = vmatpush1.msra.mxu0 0.0
        %667 = vmatprep.subr.mxu0 0.0
        %668 = vmatpush1.msra.mxu0 0.0
        %669 = vmatprep.subr.mxu0 0.0
        %670 = vmatpush1.msra.mxu0 0.0
        %671 = vmatprep.subr.mxu0 0.0
        %672 = vmatpush1.msra.mxu0 0.0
        %673 = vmatprep.subr.mxu0 0.0
        %674 = vmatpush1.msra.mxu0 0.0
        %675 = vmatprep.subr.mxu0 0.0
        %676 = vmatpush1.msra.mxu0 0.0
        %677 = vmatprep.subr.mxu0 0.0
        %678 = vmatpush1.msra.mxu0 0.0
        %679 = vmatprep.subr.mxu0 0.0
        %680 = vmatpush1.msra.mxu0 0.0
        %681 = vmatprep.subr.mxu0 0.0
        %682 = vmatpush1.msra.mxu0 0.0
        %683 = vmatprep.subr.mxu0 0.0
        %684 = vmatpush1.msra.mxu0 0.0
        %685 = vmatprep.subr.mxu0 0.0
        %686 = vmatpush1.msra.mxu0 0.0
        %687 = vmatprep.subr.mxu0 0.0
        %688 = vmatpush1.msra.mxu0 0.0
        %689 = vmatprep.subr.mxu0 0.0
        %690 = vmatpush1.msra.mxu0 0.0
        %691 = vmatprep.subr.mxu0 0.0
        %692 = vmatpush1.msra.mxu0 0.0
        %693 = vmatprep.mubr.f32.mxu0 0.0
        %v694 = vand.u32 %v288, 4294901760
        %695 = vmatmul.mubr.f32.gmra.mrb[0].mxu0 %v694
        %v696 = vpop.f32.mrb[0].mxu0
        %v697 = vadd.f32 %v614, %v696
        %v698 = vpop.f32.mrb[0].mxu0
        %699 = vdwg.mxu0
        %700 = vmatprep.subr.mxu0 0.0
        %v701 = vand.u32 %v282, 4294901760
        %702 = vmatpush1.msra.mxu0 %v701
        %703 = vmatprep.subr.mxu0 0.0
        %v704 = vand.u32 %v283, 4294901760
        %705 = vmatpush1.msra.mxu0 %v704
        %706 = vmatprep.subr.mxu0 0.0
        %v707 = vand.u32 %v284, 4294901760
        %708 = vmatpush1.msra.mxu0 %v707
        %709 = vmatprep.subr.mxu0 0.0
        %v710 = vand.u32 %v285, 4294901760
        %711 = vmatpush1.msra.mxu0 %v710
        %712 = vmatprep.subr.mxu0 0.0
        %713 = vmatpush1.msra.mxu0 0.0
        %714 = vmatprep.subr.mxu0 0.0
        %715 = vmatpush1.msra.mxu0 0.0
        %716 = vmatprep.subr.mxu0 0.0
        %717 = vmatpush1.msra.mxu0 0.0
        %718 = vmatprep.subr.mxu0 0.0
        %719 = vmatpush1.msra.mxu0 0.0
        %720 = vmatprep.subr.mxu0 0.0
        %721 = vmatpush1.msra.mxu0 0.0
        %722 = vmatprep.subr.mxu0 0.0
        %723 = vmatpush1.msra.mxu0 0.0
        %724 = vmatprep.subr.mxu0 0.0
        %725 = vmatpush1.msra.mxu0 0.0
        %726 = vmatprep.subr.mxu0 0.0
        %727 = vmatpush1.msra.mxu0 0.0
        %728 = vmatprep.subr.mxu0 0.0
        %729 = vmatpush1.msra.mxu0 0.0
        %730 = vmatprep.subr.mxu0 0.0
        %731 = vmatpush1.msra.mxu0 0.0
        %732 = vmatprep.subr.mxu0 0.0
        %733 = vmatpush1.msra.mxu0 0.0
        %734 = vmatprep.subr.mxu0 0.0
        %735 = vmatpush1.msra.mxu0 0.0
        %736 = vmatprep.subr.mxu0 0.0
        %737 = vmatpush1.msra.mxu0 0.0
        %738 = vmatprep.subr.mxu0 0.0
        %739 = vmatpush1.msra.mxu0 0.0
        %740 = vmatprep.subr.mxu0 0.0
        %741 = vmatpush1.msra.mxu0 0.0
        %742 = vmatprep.subr.mxu0 0.0
        %743 = vmatpush1.msra.mxu0 0.0
        %744 = vmatprep.subr.mxu0 0.0
        %745 = vmatpush1.msra.mxu0 0.0
        %746 = vmatprep.subr.mxu0 0.0
        %747 = vmatpush1.msra.mxu0 0.0
        %748 = vmatprep.subr.mxu0 0.0
        %749 = vmatpush1.msra.mxu0 0.0
        %750 = vmatprep.subr.mxu0 0.0
        %751 = vmatpush1.msra.mxu0 0.0
        %752 = vmatprep.subr.mxu0 0.0
        %753 = vmatpush1.msra.mxu0 0.0
        %754 = vmatprep.subr.mxu0 0.0
        %755 = vmatpush1.msra.mxu0 0.0
        %756 = vmatprep.subr.mxu0 0.0
        %757 = vmatpush1.msra.mxu0 0.0
        %758 = vmatprep.subr.mxu0 0.0
        %759 = vmatpush1.msra.mxu0 0.0
        %760 = vmatprep.subr.mxu0 0.0
        %761 = vmatpush1.msra.mxu0 0.0
        %762 = vmatprep.subr.mxu0 0.0
        %763 = vmatpush1.msra.mxu0 0.0
        %764 = vmatprep.subr.mxu0 0.0
        %765 = vmatpush1.msra.mxu0 0.0
        %766 = vmatprep.subr.mxu0 0.0
        %767 = vmatpush1.msra.mxu0 0.0
        %768 = vmatprep.mubr.f32.mxu0 0.0
        %v769 = vand.u32 %v288, 4294901760
        %770 = vmatmul.mubr.f32.gmra.mrb[0].mxu0 %v769
        %v771 = vpop.f32.mrb[0].mxu0
        %v772 = vadd.f32 %v697, %v771
        %v773 = vpop.f32.mrb[0].mxu0
        %774 = vdwg.mxu0
        %v775 = vld [vmem:[#allocation7] sm:$0xff]
        %v776 = vld [vmem:[%s280] sm:$0xff]
        %v777 = vmul.f32 %v772, %v775
        %779 = vrot.lane.b32.xlu0 %v776, 16
        %v780 = vpop.permute.xlu0 %779
        %v782 = vmul.f32 %v772, %v780
        %784 = vrot.lane.b32.xlu0 %v782, 112
        %v785 = vpop.permute.xlu0 %784
        %v787 = vsub.f32 %v777, %v785
        %vm788 = vcmask 130048
        %789 = vst.msk [vmem:[%s276] sm:$0xff] %vm788, %v787
        %v790 = vmul.f32 %v772, %v776
        %792 = vrot.lane.b32.xlu0 %v775, 16
        %v793 = vpop.permute.xlu0 %792
        %v795 = vmul.f32 %v772, %v793
        %797 = vrot.lane.b32.xlu0 %v795, 112
        %v798 = vpop.permute.xlu0 %797
        %v800 = vadd.f32 %v790, %v798
        %802 = vrot.lane.b32.xlu0 %v800, 16
        %v803 = vpop.permute.xlu0 %802
        %vm805 = vcmask 261248
        %806 = vst.msk [vmem:[%s276] sm:$0xff] %vm805, %v803
        %s807 = sand.u32 %s145, 1
        %s808 = scalar_lea.sflag [#allocation4], %s807
        %s809 = sand.u32 %s145, 1
        %s810 = smul.addr %s809, 8
        %s811 = scalar_lea.vmem [#allocation8], %s810
        // Predicated region
        $region49: #{tpu_custom_call.1} parent=35 // pred_check
          %p812 = pneg %p155
        $region50: #{tpu_custom_call.1} parent=35 // pred_check_branch
          %814 = sbr.rel (%p812) target = $region52
        $region51: #{tpu_custom_call.1} parent=35 // pred_region
          %s816 = ssub.s32 128, 128
          %817 = vsyncadd %s808, %s816
          %s818 = sadd.s32 %s26, %s27
          %s819 = smul.addr %s818, 128
          %s820 = scalar_lea.hbm %s4, %s819
          %s822 = sshll.u32 %s811, 4
          %s823 = int_to_ptr.vmem [resolvable:$true] %s822
          %825 = dma.vmem_to_hbm [thread:$0]  %s823, 128, %s820, %s808
        $region52: #{tpu_custom_call.1} parent=35 // pred_fallthru
          _
      $region36: #{tpu_custom_call.1} parent=5 // pred_fallthru
        _
      %p826 = scmp.le.s32.totalorder 2, %s17
      // Predicated region
      $region53: #{tpu_custom_call.1} parent=5 // pred_check
        %p827 = pneg %p826
      $region54: #{tpu_custom_call.1} parent=5 // pred_check_branch
        %829 = sbr.rel (%p827) target = $region56
      $region55: #{tpu_custom_call.1} parent=5 // pred_region
        %s830 = ssub.s32 %s17, 2
        // Predicated region
        $region57: #{tpu_custom_call.1} parent=55 // pred_check
          %p831 = pneg %p161
        $region58: #{tpu_custom_call.1} parent=55 // pred_check_branch
          %833 = sbr.rel (%p831) target = $region60
        $region59: #{tpu_custom_call.1} parent=55 // pred_region
          %s834 = sand.u32 %s146, 1
          %s835 = scalar_lea.sflag [#allocation4], %s834
          %s836 = sand.u32 %s146, 1
          %s837 = smul.addr %s836, 8
          %s838 = scalar_lea.vmem [#allocation8], %s837
          %839 = dma.done %s835, 128
        $region60: #{tpu_custom_call.1} parent=55 // pred_fallthru
          _
      $region56: #{tpu_custom_call.1} parent=5 // pred_fallthru
        _
    $region6: #{tpu_custom_call.1} parent=1 // loop_footer
      %s21 = sadd.s32 1, %s17
    $region7: #{tpu_custom_call.1} parent=1 // loop_footer_branch
      %16 = sbr.rel target = $region3
    $region8: #{tpu_custom_call.1} parent=1 // loop_exit
      _
    %840 = vsyncpa [#allocation3], 1
    %s841 = scalar_lea.sflag [#allocation3], 1
    %842 = vsyncpa %s841, 1
    %843 = vsyncpa [#allocation6], 1
    %844 = vsyncpa [#allocation4], 1
    %s845 = scalar_lea.sflag [#allocation4], 1
    %846 = vsyncpa %s845, 1

</llo_original>
